<compile_context>
chip_gen: v5e
topology: v5e:2x2
jax: 0.10.0
libtpu: 0.0.40
codegen_flags: <defaults>
</compile_context>

<pallas_src>
import functools
import math

import jax
import jax.numpy as jnp
from jax.experimental import pallas as pl


def _self_attention_head_kernel(x_ref, w_qkv_ref, o_ref, *, lane_dense_out):
    # x_ref: (B, T, C); w_qkv_ref: (C, 3H), Q columns pre-scaled by C**-0.5.
    # o_ref: (B, T*H) if lane_dense_out else (B, T, H).
    x = x_ref[...]                        # (B, T, C)
    w = w_qkv_ref[...]                    # (C, 3H)
    B, T, C = x.shape
    H = w.shape[-1] // 3

    # Single fused Q/K/V projection.  Broadcast the weight over batch so the
    # contraction is the well-supported "batch dim on both operands" form.
    w_b = jnp.broadcast_to(w[None, :, :], (B, C, 3 * H))
    qkv = jnp.einsum("btc,bch->bth", x, w_b,
                     preferred_element_type=jnp.float32)       # (B, T, 3H)
    k = qkv[:, :, 0:H]
    q = qkv[:, :, H:2 * H]                # already carries the C**-0.5 scale
    v = qkv[:, :, 2 * H:3 * H]

    # Attention scores: contract the head dim directly (no explicit .T).
    s = jnp.einsum("bqh,bkh->bqk", q, k,
                   preferred_element_type=jnp.float32)         # (B, T, T)

    # Causal (lower-triangular) mask.
    row = jax.lax.broadcasted_iota(jnp.int32, (B, T, T), 1)
    col = jax.lax.broadcasted_iota(jnp.int32, (B, T, T), 2)
    s = jnp.where(col <= row, s, -jnp.inf)

    # Numerically stable softmax along the key axis.
    m = jnp.max(s, axis=-1, keepdims=True)
    p = jnp.exp(s - m)
    denom = jnp.sum(p, axis=-1, keepdims=True)
    r = pl.reciprocal(denom, approx=True)      # EUP vrcp (frees VALU cycles)
    r = r * (2.0 - denom * r)                  # one Newton step -> ~f32 exact
    p = p * r

    # (dropout on the attention weights is the identity in eval mode)

    out = jnp.einsum("bqk,bkh->bqh", p, v,
                     preferred_element_type=jnp.float32)       # (B, T, H)

    if lane_dense_out:
        # Lane-dense store: (B, T*H) slab (128 lanes) -> unmasked vst.
        o_ref[...] = out.reshape(B, T * H).astype(o_ref.dtype)
    else:
        o_ref[...] = out.astype(o_ref.dtype)


def self_attention_head(x, wk_t, wq_t, wv_t):
    """x: [B, T, C]; wk_t/wq_t/wv_t: [C, H] (transposed nn.Linear weights)."""
    B, T, C = x.shape
    H = wk_t.shape[1]

    # Fuse the three projections; fold the 1/sqrt(C) scale into Q's weights.
    scale = C ** (-0.5)
    w_qkv = jnp.concatenate([wk_t, wq_t * scale, wv_t], axis=-1)   # (C, 3H)

    def call(lane_dense_out):
        if lane_dense_out:
            out_shape = jax.ShapeDtypeStruct((B, T * H), x.dtype)
            out_spec = pl.BlockSpec((B, T * H), lambda: (0, 0))
        else:
            out_shape = jax.ShapeDtypeStruct((B, T, H), x.dtype)
            out_spec = pl.BlockSpec((B, T, H), lambda: (0, 0, 0))
        out = pl.pallas_call(
            functools.partial(_self_attention_head_kernel,
                              lane_dense_out=lane_dense_out),
            out_shape=out_shape,
            # Single invocation (no grid): whole (B,T,C) block + fused weight.
            in_specs=[
                pl.BlockSpec((B, T, C), lambda: (0, 0, 0)),
                pl.BlockSpec((C, 3 * H), lambda: (0, 0)),
            ],
            out_specs=out_spec,
        )(x, w_qkv)
        return out.reshape(B, T, H) if lane_dense_out else out

    if (T * H) % 128 == 0:
        try:
            return call(lane_dense_out=True)
        except Exception:
            # Fall back if this Mosaic build can't lower the minor-dim merge
            # reshape used for the lane-dense output slab.
            pass
    return call(lane_dense_out=False)


def reference(x, wk_t, wq_t, wv_t):
    B, T, C = x.shape
    k = x @ wk_t
    q = x @ wq_t
    v = x @ wv_t
    w = (q @ jnp.swapaxes(k, -2, -1)) * (C ** -0.5)
    mask = jnp.tril(jnp.ones((T, T), dtype=bool))
    w = jnp.where(mask, w, -jnp.inf)
    w = jax.nn.softmax(w, axis=-1)
    return w @ v


if __name__ == "__main__":
    # module hyperparameters
    n_embeddings = 32          # C
    head_size = 16             # H
    block_size = 8             # T (== sequence length used here)
    dropout_probability = 0.1  # identity in eval mode

    B, T, C, H = 2, block_size, n_embeddings, head_size

    key = jax.random.PRNGKey(0)
    kx, kk, kq, kv = jax.random.split(key, 4)

    x = jax.random.normal(kx, (B, T, C), dtype=jnp.float32)

    # nn.Linear(C, H, bias=False) weight is [H, C], init U(-1/sqrt(C), 1/sqrt(C)).
    bound = 1.0 / math.sqrt(C)
    wk = jax.random.uniform(kk, (H, C), jnp.float32, -bound, bound)
    wq = jax.random.uniform(kq, (H, C), jnp.float32, -bound, bound)
    wv = jax.random.uniform(kv, (H, C), jnp.float32, -bound, bound)

    # pass transposed weights [C, H] so the kernel computes x @ W.T
    out = self_attention_head(x, wk.T, wq.T, wv.T)
    out = jax.block_until_ready(out)

    ref = reference(x, wk.T, wq.T, wv.T)
    assert out.shape == (B, T, H)
    assert jnp.allclose(out, ref, atol=1e-4, rtol=1e-4), "mismatch vs reference"

    print("KERNEL_OK")
</pallas_src>

<mosaic_0001>
module attributes {stable_mosaic.version = 11 : i64} {
  func.func @_self_attention_head_kernel(%arg0: memref<2x8x32xf32, #tpu.memory_space<vmem>>, %arg1: memref<32x48xf32, #tpu.memory_space<vmem>>, %arg2: memref<2x128xf32, #tpu.memory_space<vmem>>) attributes {dimension_semantics = [], scalar_prefetch = 0 : i64, scratch_operands = 0 : i64, tpu.core_type = #tpu.core_type<tc>} {
    %c0 = arith.constant 0 : index
    %c0_0 = arith.constant 0 : index
    %c0_1 = arith.constant 0 : index
    %0 = vector.load %arg0[%c0, %c0_0, %c0_1] : memref<2x8x32xf32, #tpu.memory_space<vmem>>, vector<2x8x32xf32>
    %c0_2 = arith.constant 0 : index
    %c0_3 = arith.constant 0 : index
    %1 = vector.load %arg1[%c0_2, %c0_3] : memref<32x48xf32, #tpu.memory_space<vmem>>, vector<32x48xf32>
    %2 = vector.shape_cast %1 : vector<32x48xf32> to vector<1x32x48xf32>
    %3 = vector.shape_cast %2 : vector<1x32x48xf32> to vector<1x32x48xf32>
    %4 = vector.broadcast %3 : vector<1x32x48xf32> to vector<2x32x48xf32>
    "tpu.trace_start"() <{level = 10 : i32, message = "btc,bch->bth"}> : () -> ()
    %cst = arith.constant dense<0.000000e+00> : vector<2x8x48xf32>
    %5 = tpu.matmul %0, %4, %cst {dimension_numbers = #tpu.dot_dimension_numbers<[2], [1], [1], [2], [0, 0, 0, 1, 1, 2], [0], [0]>} : vector<2x8x32xf32>, vector<2x32x48xf32>, vector<2x8x48xf32> -> vector<2x8x48xf32>
    "tpu.trace_stop"() : () -> ()
    %6 = vector.extract_strided_slice %5 {offsets = [0, 0, 0], sizes = [2, 8, 16], strides = [1, 1, 1]} : vector<2x8x48xf32> to vector<2x8x16xf32>
    %7 = vector.extract_strided_slice %5 {offsets = [0, 0, 16], sizes = [2, 8, 16], strides = [1, 1, 1]} : vector<2x8x48xf32> to vector<2x8x16xf32>
    %8 = vector.extract_strided_slice %5 {offsets = [0, 0, 32], sizes = [2, 8, 16], strides = [1, 1, 1]} : vector<2x8x48xf32> to vector<2x8x16xf32>
    "tpu.trace_start"() <{level = 10 : i32, message = "bqh,bkh->bqk"}> : () -> ()
    %cst_4 = arith.constant dense<0.000000e+00> : vector<2x8x8xf32>
    %9 = tpu.matmul %7, %6, %cst_4 {dimension_numbers = #tpu.dot_dimension_numbers<[2], [2], [1], [1], [0, 0, 0, 1, 1, 1], [0], [0]>} : vector<2x8x16xf32>, vector<2x8x16xf32>, vector<2x8x8xf32> -> vector<2x8x8xf32>
    "tpu.trace_stop"() : () -> ()
    %10 = tpu.iota {dimensions = array<i32: 1>} : vector<2x8x8xi32>
    %11 = tpu.iota {dimensions = array<i32: 2>} : vector<2x8x8xi32>
    %12 = arith.cmpi sle, %11, %10 : vector<2x8x8xi32>
    %cst_5 = arith.constant 0xFF800000 : f32
    %13 = vector.broadcast %cst_5 : f32 to vector<2x8x8xf32>
    %14 = arith.select %12, %9, %13 : vector<2x8x8xi1>, vector<2x8x8xf32>
    %cst_6 = arith.constant dense<0xFF800000> : vector<2x8xf32>
    %15 = vector.multi_reduction <maximumf>, %14, %cst_6 [2] : vector<2x8x8xf32> to vector<2x8xf32>
    %16 = vector.shape_cast %15 : vector<2x8xf32> to vector<2x8x1xf32>
    %17 = vector.broadcast %16 : vector<2x8x1xf32> to vector<2x8x8xf32>
    %18 = arith.subf %14, %17 : vector<2x8x8xf32>
    %19 = math.exp %18 : vector<2x8x8xf32>
    %cst_7 = arith.constant dense<0.000000e+00> : vector<2x8xf32>
    %20 = vector.multi_reduction <add>, %19, %cst_7 [2] : vector<2x8x8xf32> to vector<2x8xf32>
    %21 = vector.shape_cast %20 : vector<2x8xf32> to vector<2x8x1xf32>
    %22 = tpu.reciprocal %21 {approx = true} : vector<2x8x1xf32> -> vector<2x8x1xf32>
    %23 = arith.mulf %21, %22 : vector<2x8x1xf32>
    %cst_8 = arith.constant 2.000000e+00 : f32
    %24 = vector.broadcast %cst_8 : f32 to vector<2x8x1xf32>
    %25 = arith.subf %24, %23 : vector<2x8x1xf32>
    %26 = arith.mulf %22, %25 : vector<2x8x1xf32>
    %27 = vector.broadcast %26 : vector<2x8x1xf32> to vector<2x8x8xf32>
    %28 = arith.mulf %19, %27 : vector<2x8x8xf32>
    "tpu.trace_start"() <{level = 10 : i32, message = "bqk,bkh->bqh"}> : () -> ()
    %cst_9 = arith.constant dense<0.000000e+00> : vector<2x8x16xf32>
    %29 = tpu.matmul %28, %8, %cst_9 {dimension_numbers = #tpu.dot_dimension_numbers<[2], [1], [1], [2], [0, 0, 0, 1, 1, 2], [0], [0]>} : vector<2x8x8xf32>, vector<2x8x16xf32>, vector<2x8x16xf32> -> vector<2x8x16xf32>
    "tpu.trace_stop"() : () -> ()
    %30 = vector.shape_cast %29 : vector<2x8x16xf32> to vector<2x128xf32>
    %c0_10 = arith.constant 0 : index
    %c0_11 = arith.constant 0 : index
    %31 = vector.load %arg2[%c0_10, %c0_11] : memref<2x128xf32, #tpu.memory_space<vmem>>, vector<2x128xf32>
    tpu.vector_store %arg2[%c0_10, %c0_11], %30 {strides = array<i32>} : memref<2x128xf32, #tpu.memory_space<vmem>>, vector<2x128xf32>,
    return
  }
}

module attributes {stable_mosaic.version = 11 : i64} {
  func.func @_self_attention_head_kernel(%arg0: memref<2x8x32xf32, #tpu.memory_space<vmem>>, %arg1: memref<32x48xf32, #tpu.memory_space<vmem>>, %arg2: memref<2x8x16xf32, #tpu.memory_space<vmem>>) attributes {dimension_semantics = [], scalar_prefetch = 0 : i64, scratch_operands = 0 : i64, tpu.core_type = #tpu.core_type<tc>} {
    %c0 = arith.constant 0 : index
    %c0_0 = arith.constant 0 : index
    %c0_1 = arith.constant 0 : index
    %0 = vector.load %arg0[%c0, %c0_0, %c0_1] : memref<2x8x32xf32, #tpu.memory_space<vmem>>, vector<2x8x32xf32>
    %c0_2 = arith.constant 0 : index
    %c0_3 = arith.constant 0 : index
    %1 = vector.load %arg1[%c0_2, %c0_3] : memref<32x48xf32, #tpu.memory_space<vmem>>, vector<32x48xf32>
    %2 = vector.shape_cast %1 : vector<32x48xf32> to vector<1x32x48xf32>
    %3 = vector.shape_cast %2 : vector<1x32x48xf32> to vector<1x32x48xf32>
    %4 = vector.broadcast %3 : vector<1x32x48xf32> to vector<2x32x48xf32>
    "tpu.trace_start"() <{level = 10 : i32, message = "btc,bch->bth"}> : () -> ()
    %cst = arith.constant dense<0.000000e+00> : vector<2x8x48xf32>
    %5 = tpu.matmul %0, %4, %cst {dimension_numbers = #tpu.dot_dimension_numbers<[2], [1], [1], [2], [0, 0, 0, 1, 1, 2], [0], [0]>} : vector<2x8x32xf32>, vector<2x32x48xf32>, vector<2x8x48xf32> -> vector<2x8x48xf32>
    "tpu.trace_stop"() : () -> ()
    %6 = vector.extract_strided_slice %5 {offsets = [0, 0, 0], sizes = [2, 8, 16], strides = [1, 1, 1]} : vector<2x8x48xf32> to vector<2x8x16xf32>
    %7 = vector.extract_strided_slice %5 {offsets = [0, 0, 16], sizes = [2, 8, 16], strides = [1, 1, 1]} : vector<2x8x48xf32> to vector<2x8x16xf32>
    %8 = vector.extract_strided_slice %5 {offsets = [0, 0, 32], sizes = [2, 8, 16], strides = [1, 1, 1]} : vector<2x8x48xf32> to vector<2x8x16xf32>
    "tpu.trace_start"() <{level = 10 : i32, message = "bqh,bkh->bqk"}> : () -> ()
    %cst_4 = arith.constant dense<0.000000e+00> : vector<2x8x8xf32>
    %9 = tpu.matmul %7, %6, %cst_4 {dimension_numbers = #tpu.dot_dimension_numbers<[2], [2], [1], [1], [0, 0, 0, 1, 1, 1], [0], [0]>} : vector<2x8x16xf32>, vector<2x8x16xf32>, vector<2x8x8xf32> -> vector<2x8x8xf32>
    "tpu.trace_stop"() : () -> ()
    %10 = tpu.iota {dimensions = array<i32: 1>} : vector<2x8x8xi32>
    %11 = tpu.iota {dimensions = array<i32: 2>} : vector<2x8x8xi32>
    %12 = arith.cmpi sle, %11, %10 : vector<2x8x8xi32>
    %cst_5 = arith.constant 0xFF800000 : f32
    %13 = vector.broadcast %cst_5 : f32 to vector<2x8x8xf32>
    %14 = arith.select %12, %9, %13 : vector<2x8x8xi1>, vector<2x8x8xf32>
    %cst_6 = arith.constant dense<0xFF800000> : vector<2x8xf32>
    %15 = vector.multi_reduction <maximumf>, %14, %cst_6 [2] : vector<2x8x8xf32> to vector<2x8xf32>
    %16 = vector.shape_cast %15 : vector<2x8xf32> to vector<2x8x1xf32>
    %17 = vector.broadcast %16 : vector<2x8x1xf32> to vector<2x8x8xf32>
    %18 = arith.subf %14, %17 : vector<2x8x8xf32>
    %19 = math.exp %18 : vector<2x8x8xf32>
    %cst_7 = arith.constant dense<0.000000e+00> : vector<2x8xf32>
    %20 = vector.multi_reduction <add>, %19, %cst_7 [2] : vector<2x8x8xf32> to vector<2x8xf32>
    %21 = vector.shape_cast %20 : vector<2x8xf32> to vector<2x8x1xf32>
    %22 = tpu.reciprocal %21 {approx = true} : vector<2x8x1xf32> -> vector<2x8x1xf32>
    %23 = arith.mulf %21, %22 : vector<2x8x1xf32>
    %cst_8 = arith.constant 2.000000e+00 : f32
    %24 = vector.broadcast %cst_8 : f32 to vector<2x8x1xf32>
    %25 = arith.subf %24, %23 : vector<2x8x1xf32>
    %26 = arith.mulf %22, %25 : vector<2x8x1xf32>
    %27 = vector.broadcast %26 : vector<2x8x1xf32> to vector<2x8x8xf32>
    %28 = arith.mulf %19, %27 : vector<2x8x8xf32>
    "tpu.trace_start"() <{level = 10 : i32, message = "bqk,bkh->bqh"}> : () -> ()
    %cst_9 = arith.constant dense<0.000000e+00> : vector<2x8x16xf32>
    %29 = tpu.matmul %28, %8, %cst_9 {dimension_numbers = #tpu.dot_dimension_numbers<[2], [1], [1], [2], [0, 0, 0, 1, 1, 2], [0], [0]>} : vector<2x8x8xf32>, vector<2x8x16xf32>, vector<2x8x16xf32> -> vector<2x8x16xf32>
    "tpu.trace_stop"() : () -> ()
    %c0_10 = arith.constant 0 : index
    %c0_11 = arith.constant 0 : index
    %c0_12 = arith.constant 0 : index
    %30 = vector.load %arg2[%c0_10, %c0_11, %c0_12] : memref<2x8x16xf32, #tpu.memory_space<vmem>>, vector<2x8x16xf32>
    tpu.vector_store %arg2[%c0_10, %c0_11, %c0_12], %29 {strides = array<i32>} : memref<2x8x16xf32, #tpu.memory_space<vmem>>, vector<2x8x16xf32>,
    return
  }
}

</mosaic_0001>

<llo_original>
// kernel: tpu_custom_call.1
$region0: #{tpu_custom_call.1}
  #allocation0 [shape = 'u32[]', space=smem, size = 0x4, offset = 0x4, fixed_abs, tag = 'smem constant byte address 0x4 - core index']
  #allocation1 [shape = 'u32[72,128]{1,0:T(1,128)}', space=vmem, size = 0x9000, scoped, tag = 'internal scratch']
  %s0 = inlined_call_operand.hbm [shape: f32[2,8,32], index: 0, kind: input, shape index: {}]
  %s1 = inlined_call_operand.hbm [shape: f32[32,48], index: 1, kind: input, shape index: {}]
  %s2 = inlined_call_operand.hbm [shape: f32[2,128], index: 2, kind: output, shape index: {}]
  %s3 = sld [smem:[#allocation0]]
  $region26: #{tpu_custom_call.1} parent=0
    _
  %s5 = ssub.s32 1, %s3
  %s6 = scalar_select 0, %s5, %s3
  $region1: #{tpu_custom_call.1} parent=0
    #allocation2 [shape = 'u8[8192]{0}', space=vmem, size = 0x2000, scoped, tag = 'input window, operand 0, single buffered']
    #allocation3 [shape = 's32[1]{0}', space=sflag, size = 0x4, scoped, tag = 'scoped memory for tpu_custom_call.1']
    #allocation4 [shape = 's32[1]{0}', space=sflag, size = 0x4, scoped, tag = 'scoped memory for tpu_custom_call.1']
    #allocation5 [shape = 'u8[16384]{0}', space=vmem, size = 0x4000, scoped, tag = 'input window, operand 1, single buffered']
    #allocation6 [shape = 's32[1]{0}', space=sflag, size = 0x4, scoped, tag = 'scoped memory for tpu_custom_call.1']
    #allocation7 [shape = 'u8[1024]{0}', space=vmem, size = 0x400, scoped, tag = 'output window, operand 0, single buffered']
    %7 = vsyncpa [#allocation3], 0
    %8 = vsyncpa [#allocation6], 0
    %9 = vsyncpa [#allocation4], 0
    // Predicated region
    $region2: #{tpu_custom_call.1} parent=1 // pred_check
      _
    $region3: #{tpu_custom_call.1} parent=1 // pred_check_branch
      %11 = sbr.rel (0) target = $region5
    $region4: #{tpu_custom_call.1} parent=1 // pred_region
      %13 = vsyncadd [#allocation3], 0
      %s14 = sshll.u32 %s0, 4
      %s15 = int_to_ptr.hbm [resolvable:$true] %s14
      %s16 = sshll.u32 [#allocation2], 4
      %s17 = int_to_ptr.vmem [resolvable:$true] %s16
      %22 = dma.hbm_to_vmem [thread:$0]  %s15, 256, %s17, [#allocation3], 128, 128, 8
    $region5: #{tpu_custom_call.1} parent=1 // pred_fallthru
      _
    // Predicated region
    $region6: #{tpu_custom_call.1} parent=1 // pred_check
      _
    $region7: #{tpu_custom_call.1} parent=1 // pred_check_branch
      %24 = sbr.rel (0) target = $region9
    $region8: #{tpu_custom_call.1} parent=1 // pred_region
      %26 = vsyncadd [#allocation6], 0
      %s27 = sshll.u32 %s1, 4
      %s28 = int_to_ptr.hbm [resolvable:$true] %s27
      %s29 = sshll.u32 [#allocation5], 4
      %s30 = int_to_ptr.vmem [resolvable:$true] %s29
      %35 = dma.hbm_to_vmem [thread:$0]  %s28, 512, %s30, [#allocation6], 128, 128, 8
    $region9: #{tpu_custom_call.1} parent=1 // pred_fallthru
      _
    // Predicated region
    $region10: #{tpu_custom_call.1} parent=1 // pred_check
      _
    $region11: #{tpu_custom_call.1} parent=1 // pred_check_branch
      %37 = sbr.rel (0) target = $region13
    $region12: #{tpu_custom_call.1} parent=1 // pred_region
      %39 = dma.done [#allocation3], 256
    $region13: #{tpu_custom_call.1} parent=1 // pred_fallthru
      _
    // Predicated region
    $region14: #{tpu_custom_call.1} parent=1 // pred_check
      _
    $region15: #{tpu_custom_call.1} parent=1 // pred_check_branch
      %41 = sbr.rel (0) target = $region17
    $region16: #{tpu_custom_call.1} parent=1 // pred_region
      %43 = dma.done [#allocation6], 512
    $region17: #{tpu_custom_call.1} parent=1 // pred_fallthru
      _
    %v44 = vld [vmem:[#allocation2] sm:$0xff]
    %v45 = vld [vmem:[#allocation2 + $0x8] sm:$0xff]
    %v46 = vld [vmem:[#allocation5] sm:$0xff]
    %v47 = vld [vmem:[#allocation5 + $0x8] sm:$0xff]
    %v48 = vld [vmem:[#allocation5 + $0x10] sm:$0xff]
    %v49 = vld [vmem:[#allocation5 + $0x18] sm:$0xff]
    %vm50 = vcmask 261120
    %v52 = vsel %vm50, %v44, 0
    %54 = vmatpush.msra.mxu0 0.0
    %55 = vmatpush.msra.mxu0 0.0
    %56 = vmatpush.msra.mxu0 0.0
    %57 = vmatpush.msra.mxu0 0.0
    %58 = vmatpush.msra.mxu0 0.0
    %59 = vmatpush.msra.mxu0 0.0
    %60 = vmatpush.msra.mxu0 0.0
    %61 = vmatpush.msra.mxu0 0.0
    %62 = vmatpush.msra.mxu0 0.0
    %63 = vmatpush.msra.mxu0 0.0
    %64 = vmatpush.msra.mxu0 0.0
    %65 = vmatpush.msra.mxu0 0.0
    %66 = vmatpush.msra.mxu0 %v49
    %67 = vmatpush.msra.mxu0 %v48
    %68 = vmatpush.msra.mxu0 %v47
    %69 = vmatpush.msra.mxu0 %v46
    %70 = vmatmul.f32.gmra.mxu0 %v52
    %v71 = vpop.f32.mrf.mxu0
    %v72 = vadd.f32 0.0, %v71
    %73 = vdwg.mxu0
    %v75 = vsel %vm50, %v45, 0
    %77 = vmatpush.msra.mxu0 0.0
    %78 = vmatpush.msra.mxu0 0.0
    %79 = vmatpush.msra.mxu0 0.0
    %80 = vmatpush.msra.mxu0 0.0
    %81 = vmatpush.msra.mxu0 0.0
    %82 = vmatpush.msra.mxu0 0.0
    %83 = vmatpush.msra.mxu0 0.0
    %84 = vmatpush.msra.mxu0 0.0
    %85 = vmatpush.msra.mxu0 0.0
    %86 = vmatpush.msra.mxu0 0.0
    %87 = vmatpush.msra.mxu0 0.0
    %88 = vmatpush.msra.mxu0 0.0
    %89 = vmatpush.msra.mxu0 %v49
    %90 = vmatpush.msra.mxu0 %v48
    %91 = vmatpush.msra.mxu0 %v47
    %92 = vmatpush.msra.mxu0 %v46
    %93 = vmatmul.f32.gmra.mxu0 %v75
    %v94 = vpop.f32.mrf.mxu0
    %v95 = vadd.f32 0.0, %v94
    %96 = vdwg.mxu0
    %98 = vrot.lane.b32.xlu0 %v72, 112
    %v99 = vpop.permute.xlu0 %98
    %vm100 = vcmask 130048
    %v101 = vsel %vm100, %v99, 0
    %v103 = vsel %vm100, %v72, 0
    %105 = vmatpush.xpose.msra.mxu0 0.0
    %106 = vmatpush.xpose.msra.mxu0 0.0
    %107 = vmatpush.xpose.msra.mxu0 0.0
    %108 = vmatpush.xpose.msra.mxu0 0.0
    %109 = vmatpush.xpose.msra.mxu0 0.0
    %110 = vmatpush.xpose.msra.mxu0 0.0
    %111 = vmatpush.xpose.msra.mxu0 0.0
    %112 = vmatpush.xpose.msra.mxu0 0.0
    %113 = vmatpush.xpose.msra.mxu0 0.0
    %114 = vmatpush.xpose.msra.mxu0 0.0
    %115 = vmatpush.xpose.msra.mxu0 0.0
    %116 = vmatpush.xpose.msra.mxu0 0.0
    %117 = vmatpush.xpose.msra.mxu0 0.0
    %118 = vmatpush.xpose.msra.mxu0 0.0
    %119 = vmatpush.xpose.msra.mxu0 0.0
    %120 = vmatpush.xpose.msra.mxu0 %v103
    %121 = vmatmul.f32.gmra.mxu0 %v101
    %v122 = vpop.f32.mrf.mxu0
    %v123 = vadd.f32 0.0, %v122
    %124 = vdwg.mxu0
    %126 = vrot.lane.b32.xlu0 %v95, 112
    %v127 = vpop.permute.xlu0 %126
    %v128 = vsel %vm100, %v127, 0
    %v130 = vsel %vm100, %v95, 0
    %132 = vmatpush.xpose.msra.mxu0 0.0
    %133 = vmatpush.xpose.msra.mxu0 0.0
    %134 = vmatpush.xpose.msra.mxu0 0.0
    %135 = vmatpush.xpose.msra.mxu0 0.0
    %136 = vmatpush.xpose.msra.mxu0 0.0
    %137 = vmatpush.xpose.msra.mxu0 0.0
    %138 = vmatpush.xpose.msra.mxu0 0.0
    %139 = vmatpush.xpose.msra.mxu0 0.0
    %140 = vmatpush.xpose.msra.mxu0 0.0
    %141 = vmatpush.xpose.msra.mxu0 0.0
    %142 = vmatpush.xpose.msra.mxu0 0.0
    %143 = vmatpush.xpose.msra.mxu0 0.0
    %144 = vmatpush.xpose.msra.mxu0 0.0
    %145 = vmatpush.xpose.msra.mxu0 0.0
    %146 = vmatpush.xpose.msra.mxu0 0.0
    %147 = vmatpush.xpose.msra.mxu0 %v130
    %148 = vmatmul.f32.gmra.mxu0 %v128
    %v149 = vpop.f32.mrf.mxu0
    %v150 = vadd.f32 0.0, %v149
    %151 = vdwg.mxu0
    %v152 = vlaneseq
    %v153 = vshrl.u32 %v152, 7
    %v154 = vlaneseq
    %v155 = vand.u32 %v154, 127
    %vm156 = vcmp.le.s32.totalorder %v155, %v153
    %v157 = vsel %vm156, %v123, -inf
    %v158 = vsel %vm156, %v150, -inf
    %vm159 = vcmask 64512
    %v160 = vsel %vm159, %v157, -inf
    %161 = vmax.xlane.f32.xlu0 %v160
    %v162 = vpop.xlane.xlu0 %161
    %v163 = vsel %vm159, %v158, -inf
    %164 = vmax.xlane.f32.xlu0 %v163
    %v165 = vpop.xlane.xlu0 %164
    %v166 = vsub.f32 %v157, %v162
    %v167 = vsub.f32 %v158, %v165
    %v168 = vmul.f32 %v166, 1.442695
    %v169 = vpow.pop %v168
    %v170 = vmul.f32 %v167, 1.442695
    %v171 = vpow.pop %v170
    %v172 = vsel %vm159, %v169, 0.0
    %173 = vadd.xlane.f32.xlu0 %v172
    %v174 = vpop.xlane.xlu0 %173
    %v175 = vsel %vm159, %v171, 0.0
    %176 = vadd.xlane.f32.xlu0 %v175
    %v177 = vpop.xlane.xlu0 %176
    %v178 = vrcp.pop %v174
    %v179 = vrcp.pop %v177
    %v180 = vmul.f32 %v174, %v178
    %v181 = vmul.f32 %v177, %v179
    %v182 = vsub.f32 2.0, %v180
    %v183 = vsub.f32 2.0, %v181
    %v184 = vmul.f32 %v178, %v182
    %v185 = vmul.f32 %v179, %v183
    %v186 = vmul.f32 %v169, %v184
    %v187 = vmul.f32 %v171, %v185
    %188 = vrot.lane.b32.xlu0 %v72, 96
    %v189 = vpop.permute.xlu0 %188
    %v192 = vsel %vm159, %v186, 0
    %194 = vmatpush.msra.mxu0 0.0
    %195 = vmatpush.msra.mxu0 0.0
    %196 = vmatpush.msra.mxu0 0.0
    %197 = vmatpush.msra.mxu0 0.0
    %198 = vmatpush.msra.mxu0 0.0
    %199 = vmatpush.msra.mxu0 0.0
    %200 = vmatpush.msra.mxu0 0.0
    %201 = vmatpush.msra.mxu0 0.0
    %202 = vmatpush.msra.mxu0 0.0
    %203 = vmatpush.msra.mxu0 0.0
    %204 = vmatpush.msra.mxu0 0.0
    %205 = vmatpush.msra.mxu0 0.0
    %206 = vmatpush.msra.mxu0 0.0
    %207 = vmatpush.msra.mxu0 0.0
    %208 = vmatpush.msra.mxu0 0.0
    %209 = vmatpush.msra.mxu0 %v189
    %210 = vmatmul.f32.gmra.mxu0 %v192
    %v211 = vpop.f32.mrf.mxu0
    %v212 = vadd.f32 0.0, %v211
    %213 = vdwg.mxu0
    %214 = vrot.lane.b32.xlu0 %v95, 96
    %v215 = vpop.permute.xlu0 %214
    %v218 = vsel %vm159, %v187, 0
    %220 = vmatpush.msra.mxu0 0.0
    %221 = vmatpush.msra.mxu0 0.0
    %222 = vmatpush.msra.mxu0 0.0
    %223 = vmatpush.msra.mxu0 0.0
    %224 = vmatpush.msra.mxu0 0.0
    %225 = vmatpush.msra.mxu0 0.0
    %226 = vmatpush.msra.mxu0 0.0
    %227 = vmatpush.msra.mxu0 0.0
    %228 = vmatpush.msra.mxu0 0.0
    %229 = vmatpush.msra.mxu0 0.0
    %230 = vmatpush.msra.mxu0 0.0
    %231 = vmatpush.msra.mxu0 0.0
    %232 = vmatpush.msra.mxu0 0.0
    %233 = vmatpush.msra.mxu0 0.0
    %234 = vmatpush.msra.mxu0 0.0
    %235 = vmatpush.msra.mxu0 %v215
    %236 = vmatmul.f32.gmra.mxu0 %v218
    %v237 = vpop.f32.mrf.mxu0
    %v238 = vadd.f32 0.0, %v237
    %239 = vdwg.mxu0
    %v240 = vrot.slane %v212, 4
    %vm241 = vcmask 1047556
    %v242 = vsel %vm241, 0.0, %v240
    %v244 = vunpack.c.l.s4 1983009808
    %v245 = vunpack.c.0.s8 %v244
    %v246 = vperm.slane %v212, %v245
    %v248 = vunpack.c.l.s4 1983009808
    %v249 = vunpack.c.0.s8 %v248
    %v250 = vperm.slane %v242, %v249
    %v251 = vrot.slane %v238, 4
    %v252 = vsel %vm241, 0.0, %v251
    %v254 = vunpack.c.l.s4 1983009808
    %v255 = vunpack.c.0.s8 %v254
    %v256 = vperm.slane %v238, %v255
    %v258 = vunpack.c.l.s4 1983009808
    %v259 = vunpack.c.0.s8 %v258
    %v260 = vperm.slane %v252, %v259
    %v261 = vrot.slane %v256, 4
    %v262 = vsel %vm241, %v261, %v246
    %v263 = vrot.slane %v246, 4
    %v264 = vsel %vm241, %v256, %v263
    %v266 = vunpack.c.l.s4 1934713408
    %v267 = vunpack.c.0.s8 %v266
    %v268 = vperm.slane %v262, %v267
    %v270 = vunpack.c.l.s4 1934713408
    %v271 = vunpack.c.0.s8 %v270
    %v272 = vperm.slane %v264, %v271
    %v273 = vrot.slane %v260, 4
    %v274 = vsel %vm241, %v273, %v250
    %v275 = vrot.slane %v250, 4
    %v276 = vsel %vm241, %v260, %v275
    %v278 = vunpack.c.l.s4 1934713408
    %v279 = vunpack.c.0.s8 %v278
    %v280 = vperm.slane %v274, %v279
    %v282 = vunpack.c.l.s4 1934713408
    %v283 = vunpack.c.0.s8 %v282
    %v284 = vperm.slane %v276, %v283
    %v285 = vrot.slane %v268, 4
    %v286 = vsel %vm241, 0.0, %v285
    %v287 = vrot.slane %v272, 4
    %v288 = vsel %vm241, 0.0, %v287
    %v289 = vrot.slane %v280, 4
    %v290 = vsel %vm241, 0.0, %v289
    %v291 = vrot.slane %v284, 4
    %v292 = vsel %vm241, 0.0, %v291
    %294 = vrot.lane.b32.xlu0 %v286, 16
    %v295 = vpop.permute.xlu0 %294
    %298 = vrot.lane.b32.xlu0 %v272, 32
    %v299 = vpop.permute.xlu0 %298
    %302 = vrot.lane.b32.xlu0 %v288, 48
    %v303 = vpop.permute.xlu0 %302
    %306 = vrot.lane.b32.xlu0 %v280, 64
    %v307 = vpop.permute.xlu0 %306
    %310 = vrot.lane.b32.xlu0 %v290, 80
    %v311 = vpop.permute.xlu0 %310
    %314 = vrot.lane.b32.xlu0 %v284, 96
    %v315 = vpop.permute.xlu0 %314
    %318 = vrot.lane.b32.xlu0 %v292, 112
    %v319 = vpop.permute.xlu0 %318
    %v321 = vsel %vm100, %v268, %v295
    %v322 = vsel %vm50, %v321, %v299
    %vm323 = vcmask 392192
    %v324 = vsel %vm323, %v322, %v303
    %vm325 = vcmask 523264
    %v326 = vsel %vm325, %v324, %v307
    %vm327 = vcmask 654336
    %v328 = vsel %vm327, %v326, %v311
    %vm329 = vcmask 785408
    %v330 = vsel %vm329, %v328, %v315
    %vm331 = vcmask 916480
    %v332 = vsel %vm331, %v330, %v319
    %333 = vst [vmem:[#allocation7] sm:$0x3] %v332
    // Predicated region
    $region18: #{tpu_custom_call.1} parent=1 // pred_check
      _
    $region19: #{tpu_custom_call.1} parent=1 // pred_check_branch
      %335 = sbr.rel (0) target = $region21
    $region20: #{tpu_custom_call.1} parent=1 // pred_region
      %337 = vsyncadd [#allocation4], 0
      %s339 = sshll.u32 [#allocation7], 4
      %s340 = int_to_ptr.vmem [resolvable:$true] %s339
      %s341 = sshll.u32 %s2, 4
      %s342 = int_to_ptr.hbm [resolvable:$true] %s341
      %344 = dma.vmem_to_hbm [thread:$0]  %s340, 32, %s342, [#allocation4]
    $region21: #{tpu_custom_call.1} parent=1 // pred_fallthru
      _
    // Predicated region
    $region22: #{tpu_custom_call.1} parent=1 // pred_check
      _
    $region23: #{tpu_custom_call.1} parent=1 // pred_check_branch
      %346 = sbr.rel (0) target = $region25
    $region24: #{tpu_custom_call.1} parent=1 // pred_region
      %348 = dma.done [#allocation4], 32
    $region25: #{tpu_custom_call.1} parent=1 // pred_fallthru
      _
    %349 = vsyncpa [#allocation3], 1
    %350 = vsyncpa [#allocation6], 1
    %351 = vsyncpa [#allocation4], 1

// kernel: tpu_custom_call.1
$region0: #{tpu_custom_call.1}
  #allocation0 [shape = 'u32[]', space=smem, size = 0x4, offset = 0x4, fixed_abs, tag = 'smem constant byte address 0x4 - core index']
  #allocation1 [shape = 'u32[72,128]{1,0:T(1,128)}', space=vmem, size = 0x9000, scoped, tag = 'internal scratch']
  %s0 = inlined_call_operand.hbm [shape: f32[2,8,32], index: 0, kind: input, shape index: {}]
  %s1 = inlined_call_operand.hbm [shape: f32[32,48], index: 1, kind: input, shape index: {}]
  %s2 = inlined_call_operand.hbm [shape: f32[2,8,16], index: 2, kind: output, shape index: {}]
  %s3 = sld [smem:[#allocation0]]
  $region26: #{tpu_custom_call.1} parent=0
    _
  %s5 = ssub.s32 1, %s3
  %s6 = scalar_select 0, %s5, %s3
  $region1: #{tpu_custom_call.1} parent=0
    #allocation2 [shape = 'u8[8192]{0}', space=vmem, size = 0x2000, scoped, tag = 'input window, operand 0, single buffered']
    #allocation3 [shape = 's32[1]{0}', space=sflag, size = 0x4, scoped, tag = 'scoped memory for tpu_custom_call.1']
    #allocation4 [shape = 's32[1]{0}', space=sflag, size = 0x4, scoped, tag = 'scoped memory for tpu_custom_call.1']
    #allocation5 [shape = 'u8[16384]{0}', space=vmem, size = 0x4000, scoped, tag = 'input window, operand 1, single buffered']
    #allocation6 [shape = 's32[1]{0}', space=sflag, size = 0x4, scoped, tag = 'scoped memory for tpu_custom_call.1']
    #allocation7 [shape = 'u8[8192]{0}', space=vmem, size = 0x2000, scoped, tag = 'output window, operand 0, single buffered']
    %7 = vsyncpa [#allocation3], 0
    %8 = vsyncpa [#allocation6], 0
    %9 = vsyncpa [#allocation4], 0
    // Predicated region
    $region2: #{tpu_custom_call.1} parent=1 // pred_check
      _
    $region3: #{tpu_custom_call.1} parent=1 // pred_check_branch
      %11 = sbr.rel (0) target = $region5
    $region4: #{tpu_custom_call.1} parent=1 // pred_region
      %13 = vsyncadd [#allocation3], 0
      %s14 = sshll.u32 %s0, 4
      %s15 = int_to_ptr.hbm [resolvable:$true] %s14
      %s16 = sshll.u32 [#allocation2], 4
      %s17 = int_to_ptr.vmem [resolvable:$true] %s16
      %22 = dma.hbm_to_vmem [thread:$0]  %s15, 256, %s17, [#allocation3], 128, 128, 8
    $region5: #{tpu_custom_call.1} parent=1 // pred_fallthru
      _
    // Predicated region
    $region6: #{tpu_custom_call.1} parent=1 // pred_check
      _
    $region7: #{tpu_custom_call.1} parent=1 // pred_check_branch
      %24 = sbr.rel (0) target = $region9
    $region8: #{tpu_custom_call.1} parent=1 // pred_region
      %26 = vsyncadd [#allocation6], 0
      %s27 = sshll.u32 %s1, 4
      %s28 = int_to_ptr.hbm [resolvable:$true] %s27
      %s29 = sshll.u32 [#allocation5], 4
      %s30 = int_to_ptr.vmem [resolvable:$true] %s29
      %35 = dma.hbm_to_vmem [thread:$0]  %s28, 512, %s30, [#allocation6], 128, 128, 8
    $region9: #{tpu_custom_call.1} parent=1 // pred_fallthru
      _
    // Predicated region
    $region10: #{tpu_custom_call.1} parent=1 // pred_check
      _
    $region11: #{tpu_custom_call.1} parent=1 // pred_check_branch
      %37 = sbr.rel (0) target = $region13
    $region12: #{tpu_custom_call.1} parent=1 // pred_region
      %39 = dma.done [#allocation3], 256
    $region13: #{tpu_custom_call.1} parent=1 // pred_fallthru
      _
    // Predicated region
    $region14: #{tpu_custom_call.1} parent=1 // pred_check
      _
    $region15: #{tpu_custom_call.1} parent=1 // pred_check_branch
      %41 = sbr.rel (0) target = $region17
    $region16: #{tpu_custom_call.1} parent=1 // pred_region
      %43 = dma.done [#allocation6], 512
    $region17: #{tpu_custom_call.1} parent=1 // pred_fallthru
      _
    %v44 = vld [vmem:[#allocation2] sm:$0xff]
    %v45 = vld [vmem:[#allocation2 + $0x8] sm:$0xff]
    %v46 = vld [vmem:[#allocation5] sm:$0xff]
    %v47 = vld [vmem:[#allocation5 + $0x8] sm:$0xff]
    %v48 = vld [vmem:[#allocation5 + $0x10] sm:$0xff]
    %v49 = vld [vmem:[#allocation5 + $0x18] sm:$0xff]
    %vm50 = vcmask 261120
    %v52 = vsel %vm50, %v44, 0
    %54 = vmatpush.msra.mxu0 0.0
    %55 = vmatpush.msra.mxu0 0.0
    %56 = vmatpush.msra.mxu0 0.0
    %57 = vmatpush.msra.mxu0 0.0
    %58 = vmatpush.msra.mxu0 0.0
    %59 = vmatpush.msra.mxu0 0.0
    %60 = vmatpush.msra.mxu0 0.0
    %61 = vmatpush.msra.mxu0 0.0
    %62 = vmatpush.msra.mxu0 0.0
    %63 = vmatpush.msra.mxu0 0.0
    %64 = vmatpush.msra.mxu0 0.0
    %65 = vmatpush.msra.mxu0 0.0
    %66 = vmatpush.msra.mxu0 %v49
    %67 = vmatpush.msra.mxu0 %v48
    %68 = vmatpush.msra.mxu0 %v47
    %69 = vmatpush.msra.mxu0 %v46
    %70 = vmatmul.f32.gmra.mxu0 %v52
    %v71 = vpop.f32.mrf.mxu0
    %v72 = vadd.f32 0.0, %v71
    %73 = vdwg.mxu0
    %v75 = vsel %vm50, %v45, 0
    %77 = vmatpush.msra.mxu0 0.0
    %78 = vmatpush.msra.mxu0 0.0
    %79 = vmatpush.msra.mxu0 0.0
    %80 = vmatpush.msra.mxu0 0.0
    %81 = vmatpush.msra.mxu0 0.0
    %82 = vmatpush.msra.mxu0 0.0
    %83 = vmatpush.msra.mxu0 0.0
    %84 = vmatpush.msra.mxu0 0.0
    %85 = vmatpush.msra.mxu0 0.0
    %86 = vmatpush.msra.mxu0 0.0
    %87 = vmatpush.msra.mxu0 0.0
    %88 = vmatpush.msra.mxu0 0.0
    %89 = vmatpush.msra.mxu0 %v49
    %90 = vmatpush.msra.mxu0 %v48
    %91 = vmatpush.msra.mxu0 %v47
    %92 = vmatpush.msra.mxu0 %v46
    %93 = vmatmul.f32.gmra.mxu0 %v75
    %v94 = vpop.f32.mrf.mxu0
    %v95 = vadd.f32 0.0, %v94
    %96 = vdwg.mxu0
    %98 = vrot.lane.b32.xlu0 %v72, 112
    %v99 = vpop.permute.xlu0 %98
    %vm100 = vcmask 130048
    %v101 = vsel %vm100, %v99, 0
    %v103 = vsel %vm100, %v72, 0
    %105 = vmatpush.xpose.msra.mxu0 0.0
    %106 = vmatpush.xpose.msra.mxu0 0.0
    %107 = vmatpush.xpose.msra.mxu0 0.0
    %108 = vmatpush.xpose.msra.mxu0 0.0
    %109 = vmatpush.xpose.msra.mxu0 0.0
    %110 = vmatpush.xpose.msra.mxu0 0.0
    %111 = vmatpush.xpose.msra.mxu0 0.0
    %112 = vmatpush.xpose.msra.mxu0 0.0
    %113 = vmatpush.xpose.msra.mxu0 0.0
    %114 = vmatpush.xpose.msra.mxu0 0.0
    %115 = vmatpush.xpose.msra.mxu0 0.0
    %116 = vmatpush.xpose.msra.mxu0 0.0
    %117 = vmatpush.xpose.msra.mxu0 0.0
    %118 = vmatpush.xpose.msra.mxu0 0.0
    %119 = vmatpush.xpose.msra.mxu0 0.0
    %120 = vmatpush.xpose.msra.mxu0 %v103
    %121 = vmatmul.f32.gmra.mxu0 %v101
    %v122 = vpop.f32.mrf.mxu0
    %v123 = vadd.f32 0.0, %v122
    %124 = vdwg.mxu0
    %126 = vrot.lane.b32.xlu0 %v95, 112
    %v127 = vpop.permute.xlu0 %126
    %v128 = vsel %vm100, %v127, 0
    %v130 = vsel %vm100, %v95, 0
    %132 = vmatpush.xpose.msra.mxu0 0.0
    %133 = vmatpush.xpose.msra.mxu0 0.0
    %134 = vmatpush.xpose.msra.mxu0 0.0
    %135 = vmatpush.xpose.msra.mxu0 0.0
    %136 = vmatpush.xpose.msra.mxu0 0.0
    %137 = vmatpush.xpose.msra.mxu0 0.0
    %138 = vmatpush.xpose.msra.mxu0 0.0
    %139 = vmatpush.xpose.msra.mxu0 0.0
    %140 = vmatpush.xpose.msra.mxu0 0.0
    %141 = vmatpush.xpose.msra.mxu0 0.0
    %142 = vmatpush.xpose.msra.mxu0 0.0
    %143 = vmatpush.xpose.msra.mxu0 0.0
    %144 = vmatpush.xpose.msra.mxu0 0.0
    %145 = vmatpush.xpose.msra.mxu0 0.0
    %146 = vmatpush.xpose.msra.mxu0 0.0
    %147 = vmatpush.xpose.msra.mxu0 %v130
    %148 = vmatmul.f32.gmra.mxu0 %v128
    %v149 = vpop.f32.mrf.mxu0
    %v150 = vadd.f32 0.0, %v149
    %151 = vdwg.mxu0
    %v152 = vlaneseq
    %v153 = vshrl.u32 %v152, 7
    %v154 = vlaneseq
    %v155 = vand.u32 %v154, 127
    %vm156 = vcmp.le.s32.totalorder %v155, %v153
    %v157 = vsel %vm156, %v123, -inf
    %v158 = vsel %vm156, %v150, -inf
    %vm159 = vcmask 64512
    %v160 = vsel %vm159, %v157, -inf
    %161 = vmax.xlane.f32.xlu0 %v160
    %v162 = vpop.xlane.xlu0 %161
    %v163 = vsel %vm159, %v158, -inf
    %164 = vmax.xlane.f32.xlu0 %v163
    %v165 = vpop.xlane.xlu0 %164
    %v166 = vsub.f32 %v157, %v162
    %v167 = vsub.f32 %v158, %v165
    %v168 = vmul.f32 %v166, 1.442695
    %v169 = vpow.pop %v168
    %v170 = vmul.f32 %v167, 1.442695
    %v171 = vpow.pop %v170
    %v172 = vsel %vm159, %v169, 0.0
    %173 = vadd.xlane.f32.xlu0 %v172
    %v174 = vpop.xlane.xlu0 %173
    %v175 = vsel %vm159, %v171, 0.0
    %176 = vadd.xlane.f32.xlu0 %v175
    %v177 = vpop.xlane.xlu0 %176
    %v178 = vrcp.pop %v174
    %v179 = vrcp.pop %v177
    %v180 = vmul.f32 %v174, %v178
    %v181 = vmul.f32 %v177, %v179
    %v182 = vsub.f32 2.0, %v180
    %v183 = vsub.f32 2.0, %v181
    %v184 = vmul.f32 %v178, %v182
    %v185 = vmul.f32 %v179, %v183
    %v186 = vmul.f32 %v169, %v184
    %v187 = vmul.f32 %v171, %v185
    %188 = vrot.lane.b32.xlu0 %v72, 96
    %v189 = vpop.permute.xlu0 %188
    %v192 = vsel %vm159, %v186, 0
    %194 = vmatpush.msra.mxu0 0.0
    %195 = vmatpush.msra.mxu0 0.0
    %196 = vmatpush.msra.mxu0 0.0
    %197 = vmatpush.msra.mxu0 0.0
    %198 = vmatpush.msra.mxu0 0.0
    %199 = vmatpush.msra.mxu0 0.0
    %200 = vmatpush.msra.mxu0 0.0
    %201 = vmatpush.msra.mxu0 0.0
    %202 = vmatpush.msra.mxu0 0.0
    %203 = vmatpush.msra.mxu0 0.0
    %204 = vmatpush.msra.mxu0 0.0
    %205 = vmatpush.msra.mxu0 0.0
    %206 = vmatpush.msra.mxu0 0.0
    %207 = vmatpush.msra.mxu0 0.0
    %208 = vmatpush.msra.mxu0 0.0
    %209 = vmatpush.msra.mxu0 %v189
    %210 = vmatmul.f32.gmra.mxu0 %v192
    %v211 = vpop.f32.mrf.mxu0
    %v212 = vadd.f32 0.0, %v211
    %213 = vdwg.mxu0
    %214 = vrot.lane.b32.xlu0 %v95, 96
    %v215 = vpop.permute.xlu0 %214
    %v218 = vsel %vm159, %v187, 0
    %220 = vmatpush.msra.mxu0 0.0
    %221 = vmatpush.msra.mxu0 0.0
    %222 = vmatpush.msra.mxu0 0.0
    %223 = vmatpush.msra.mxu0 0.0
    %224 = vmatpush.msra.mxu0 0.0
    %225 = vmatpush.msra.mxu0 0.0
    %226 = vmatpush.msra.mxu0 0.0
    %227 = vmatpush.msra.mxu0 0.0
    %228 = vmatpush.msra.mxu0 0.0
    %229 = vmatpush.msra.mxu0 0.0
    %230 = vmatpush.msra.mxu0 0.0
    %231 = vmatpush.msra.mxu0 0.0
    %232 = vmatpush.msra.mxu0 0.0
    %233 = vmatpush.msra.mxu0 0.0
    %234 = vmatpush.msra.mxu0 0.0
    %235 = vmatpush.msra.mxu0 %v215
    %236 = vmatmul.f32.gmra.mxu0 %v218
    %v237 = vpop.f32.mrf.mxu0
    %v238 = vadd.f32 0.0, %v237
    %239 = vdwg.mxu0
    %240 = vst.msk [vmem:[#allocation7] sm:$0xff] %vm100, %v212
    %241 = vst.msk [vmem:[#allocation7 + $0x8] sm:$0xff] %vm100, %v238
    // Predicated region
    $region18: #{tpu_custom_call.1} parent=1 // pred_check
      _
    $region19: #{tpu_custom_call.1} parent=1 // pred_check_branch
      %243 = sbr.rel (0) target = $region21
    $region20: #{tpu_custom_call.1} parent=1 // pred_region
      %245 = vsyncadd [#allocation4], 0
      %s246 = sshll.u32 [#allocation7], 4
      %s247 = int_to_ptr.vmem [resolvable:$true] %s246
      %s248 = sshll.u32 %s2, 4
      %s249 = int_to_ptr.hbm [resolvable:$true] %s248
      %254 = dma.vmem_to_hbm [thread:$0]  %s247, 256, %s249, [#allocation4], 128, 128, 8
    $region21: #{tpu_custom_call.1} parent=1 // pred_fallthru
      _
    // Predicated region
    $region22: #{tpu_custom_call.1} parent=1 // pred_check
      _
    $region23: #{tpu_custom_call.1} parent=1 // pred_check_branch
      %256 = sbr.rel (0) target = $region25
    $region24: #{tpu_custom_call.1} parent=1 // pred_region
      %258 = dma.done [#allocation4], 256
    $region25: #{tpu_custom_call.1} parent=1 // pred_fallthru
      _
    %259 = vsyncpa [#allocation3], 1
    %260 = vsyncpa [#allocation6], 1
    %261 = vsyncpa [#allocation4], 1

</llo_original>
